<compile_context>
chip_gen: v6e
topology: v6e:2x2x1
jax: 0.10.0
libtpu: 0.0.40
codegen_flags: <defaults>
</compile_context>

<pallas_src>
import functools
import math

import jax
import jax.numpy as jnp
from jax.experimental import pallas as pl
from jax.experimental.pallas import tpu as pltpu


# ----------------------------------------------------------------------------
# Helpers
# ----------------------------------------------------------------------------
def _round_up(x, m):
    return (x + m - 1) // m * m


_INV_LN2 = 1.0 / math.log(2.0)


def _pick_tile_m(M_pad, target_cols, prefer_multi_step=False):
    """Largest tm = 128*d with d | (M_pad/128), d*128 <= target_cols.

    If prefer_multi_step, also keep >=2 grid steps when M_pad allows (so the
    "parallel" grid axis actually shards across v7x's 2 TensorCores).
    """
    n = M_pad // 128
    cap = max(1, min(n, target_cols // 128))
    if prefer_multi_step and n >= 2:
        cap = min(cap, max(1, n // 2))
    for d in range(cap, 0, -1):
        if n % d == 0:
            return 128 * d
    return 128


def _target_tile_cols(Kd, C_rows, col_bytes, out_bytes, budget=24 << 20):
    """M-tile target so double-buffered col+out blocks stay within `budget`."""
    per_col = 2 * (Kd * col_bytes + C_rows * out_bytes)
    return int(min(8192, max(512, budget // max(per_col, 1))))


def _vmem_limit(tile_bytes):
    """Scoped VMEM limit from actual block bytes; capped under v7x's 64 MiB."""
    return int(min(max(int(tile_bytes * 1.5) + (2 << 20), 8 << 20), 48 << 20))


# ----------------------------------------------------------------------------
# Pallas kernels
# ----------------------------------------------------------------------------
def _matmul_bias_kernel(w_ref, col_ref, b_ref, o_ref, *, apply_relu):
    """o(C_out, tm) = relu?(w(C_out,K) @ col(K,tm) + bias(C_out,1)).

    Lane-dense output (M tile on lanes); bf16 operands, f32 MXU accumulate.
    """
    acc = jnp.dot(w_ref[...], col_ref[...], preferred_element_type=jnp.float32)
    acc = acc + b_ref[...]
    if apply_relu:
        acc = jnp.maximum(acc, 0.0)
    o_ref[...] = acc.astype(o_ref.dtype)


def _pallas_matmul_bias(wmat, col, bias, apply_relu, out_dtype=jnp.bfloat16):
    """out (C_out, M) = relu?(wmat @ col + bias), tiled over the M (lane) axis."""
    C_out, Kd = wmat.shape
    Kd2, M = col.shape
    assert Kd == Kd2

    # Pad C_out to 16 (full bf16 weight-vreg packing + full-sublane stores).
    C_pad = _round_up(C_out, 16)
    # Pad M only to the 128-lane granule (no up-to-tm waste).
    M_pad = _round_up(M, 128)

    wmat = wmat.astype(jnp.bfloat16)
    col = col.astype(jnp.bfloat16)          # no-op if activations already bf16
    bias = bias.astype(jnp.float32).reshape(-1, 1)
    if C_pad != C_out:
        wmat = jnp.pad(wmat, ((0, C_pad - C_out), (0, 0)))
        bias = jnp.pad(bias, ((0, C_pad - C_out), (0, 0)))
    if M_pad != M:
        col = jnp.pad(col, ((0, 0), (0, M_pad - M)))

    out_bytes = jnp.dtype(out_dtype).itemsize
    target = _target_tile_cols(Kd, C_pad, 2, out_bytes)
    tm = _pick_tile_m(M_pad, target, prefer_multi_step=True)
    grid_m = M_pad // tm

    tile_bytes = (2 * Kd * tm * 2            # double-buffered col (bf16)
                  + 2 * C_pad * tm * out_bytes
                  + 2 * C_pad * Kd * 2       # resident weight (bf16)
                  + 2 * C_pad * 4)           # bias
    cost = pl.CostEstimate(
        flops=2 * C_pad * Kd * M_pad,
        transcendentals=0,
        bytes_accessed=Kd * M_pad * 2 + C_pad * Kd * 2 + C_pad * M_pad * out_bytes,
    )

    kernel = functools.partial(_matmul_bias_kernel, apply_relu=apply_relu)
    out = pl.pallas_call(
        kernel,
        out_shape=jax.ShapeDtypeStruct((C_pad, M_pad), out_dtype),
        grid=(grid_m,),
        in_specs=[
            pl.BlockSpec((C_pad, Kd), lambda i: (0, 0)),   # resident weight
            pl.BlockSpec((Kd, tm), lambda i: (0, i)),
            pl.BlockSpec((C_pad, 1), lambda i: (0, 0)),
        ],
        out_specs=pl.BlockSpec((C_pad, tm), lambda i: (0, i)),
        compiler_params=pltpu.CompilerParams(
            dimension_semantics=("parallel",),
            vmem_limit_bytes=_vmem_limit(tile_bytes),
        ),
        cost_estimate=cost,
    )(wmat, col, bias)
    return out[:C_out, :M]


def _rate_bits_kernel(q_ref, sa_ref, b_ref, o_ref, acc_ref):
    """Accumulate -log2(sigmoid(sa*(q+.5)+b) - sigmoid(sa*(q-.5)+b)) into a
    (C, tm) VMEM scratch; cross-lane reduce only once, at the last grid step."""
    i = pl.program_id(0)

    @pl.when(i == 0)
    def _():
        acc_ref[...] = jnp.zeros_like(acc_ref)

    q = q_ref[...]                      # (C, tm)
    sa = sa_ref[...]                    # (C, 1) — softplus hoisted to wrapper
    b = b_ref[...]                      # (C, 1)
    upper = jax.nn.sigmoid(sa * (q + 0.5) + b)
    lower = jax.nn.sigmoid(sa * (q - 0.5) + b)
    p = jnp.maximum(upper - lower, 1e-9)          # clamp: avoid -log2(0) = inf
    acc_ref[...] += jnp.log(p) * (-_INV_LN2)      # single transcendental log

    @pl.when(i == pl.num_programs(0) - 1)
    def _():
        o_ref[...] = jnp.sum(acc_ref[...], keepdims=True)


def _pallas_rate_bits(q_cm, sa, cdf_b):
    """q_cm: (C, M) latent, sa/cdf_b: (C, 1).  Returns scalar total bits."""
    C, M = q_cm.shape
    M_pad = _round_up(M, 128)
    pad_cols = M_pad - M
    if pad_cols:
        q_cm = jnp.pad(q_cm, ((0, 0), (0, pad_cols)))

    tm = _pick_tile_m(M_pad, 8192)
    grid_m = M_pad // tm

    tile_bytes = 2 * C * tm * 4 + C * tm * 4 + 4 * C * 4 + 4
    cost = pl.CostEstimate(
        flops=10 * C * M_pad,
        transcendentals=3 * C * M_pad,
        bytes_accessed=C * M_pad * 4 + 2 * C * 4 + 4,
    )
    bits = pl.pallas_call(
        _rate_bits_kernel,
        out_shape=jax.ShapeDtypeStruct((1, 1), jnp.float32),
        grid=(grid_m,),
        in_specs=[
            pl.BlockSpec((C, tm), lambda i: (0, i)),
            pl.BlockSpec((C, 1), lambda i: (0, 0)),
            pl.BlockSpec((C, 1), lambda i: (0, 0)),
        ],
        out_specs=pl.BlockSpec((1, 1), lambda i: (0, 0)),
        scratch_shapes=[pltpu.VMEM((C, tm), jnp.float32)],
        compiler_params=pltpu.CompilerParams(
            dimension_semantics=("arbitrary",),             # reduction axis
            vmem_limit_bytes=_vmem_limit(tile_bytes),
        ),
        cost_estimate=cost,
    )(q_cm.astype(jnp.float32), sa.astype(jnp.float32),
      cdf_b.astype(jnp.float32))[0, 0]

    if pad_cols:
        # Exact wrapper-side correction for the zero-padded columns (q = 0),
        # instead of an iota/compare/select mask in the hot loop.
        p0 = jnp.maximum(jax.nn.sigmoid(0.5 * sa + cdf_b)
                         - jax.nn.sigmoid(-0.5 * sa + cdf_b), 1e-9)
        bits = bits - pad_cols * jnp.sum(jnp.log(p0) * (-_INV_LN2))
    return bits


# ----------------------------------------------------------------------------
# Conv glue: channel-major (C, B, H, W) activations throughout.
# TODO(synk): for production resolutions, generate the im2col tile inside the
# kernel from a VMEM-resident haloed activation block (memory_space=pl.ANY +
# manual DMA) instead of materializing the k*k-expanded col matrix in HBM.
# ----------------------------------------------------------------------------
def _im2col(x_cbhw, kh, kw, stride, pad_t, pad_b, pad_l, pad_r):
    """x:(C,B,H,W) -> col:(C*kh*kw, B*Ho*Wo), rows ordered (ci, ki, kj)."""
    C, B, H, W = x_cbhw.shape
    xp = jnp.pad(x_cbhw, ((0, 0), (0, 0), (pad_t, pad_b), (pad_l, pad_r)))
    Ho = (H + pad_t + pad_b - kh) // stride + 1
    Wo = (W + pad_l + pad_r - kw) // stride + 1
    taps = []
    for ki in range(kh):
        for kj in range(kw):
            taps.append(
                xp[:, :, ki:ki + stride * Ho:stride, kj:kj + stride * Wo:stride]
            )
    col = jnp.stack(taps, axis=1)                       # (C, kh*kw, B, Ho, Wo)
    col = col.reshape(C * kh * kw, B * Ho * Wo)
    return col, Ho, Wo


def conv2d_cbhw(x, w, bias, stride, pad, relu, out_dtype):
    """PyTorch-style Conv2d on (C,B,H,W) activations. w:(C_out,C_in,k,k)."""
    C_out, C_in, k, _ = w.shape
    B = x.shape[1]
    col, Ho, Wo = _im2col(x, k, k, stride, pad, pad, pad, pad)
    wmat = w.reshape(C_out, C_in * k * k)
    out = _pallas_matmul_bias(wmat, col, bias, relu, out_dtype=out_dtype)
    return out.reshape(C_out, B, Ho, Wo)


def _phase_taps_all(s, pad, k):
    """Per-phase {d_offset -> weight tap u} maps + the common d-window."""
    taps = []
    for p in range(s):
        t = {}
        for u in range(k):
            num = p + pad - u
            if num % s == 0:
                t[num // s] = u
        taps.append(t)
    d_min = min(min(t) for t in taps)
    d_max = max(max(t) for t in taps)
    return taps, d_min, d_max


def conv_transpose2d_cbhw(x, w_t, bias, stride, pad, out_pad, relu, out_dtype):
    """PyTorch-style ConvTranspose2d via phase-split (sub-pixel) convolution,
    with all s^2 phases fused into a single matmul pallas_call.

    x:(C_in,B,H,W)  w_t:(C_in,C_out,k,k)  bias:(C_out,).  No zero-upsampling:
    all phases share one stride-1 im2col over a common offset window; each
    phase's weight matrix is zero-padded to that window and stacked along
    C_out, producing one (s*s*C_out, M) slab that is interleaved with a single
    reshape/transpose (no strided scatters, no zeros-init write).
    """
    C_in, C_out, k, _ = w_t.shape
    _, B, H, W = x.shape
    s = stride
    H_out = (H - 1) * s - 2 * pad + k + out_pad
    W_out = (W - 1) * s - 2 * pad + k + out_pad
    assert H_out % s == 0 and W_out % s == 0, "unsupported transposed-conv geometry"
    n_r, n_c = H_out // s, W_out // s

    taps, d_min, d_max = _phase_taps_all(s, pad, k)
    assert d_min <= 0, "unsupported transposed-conv geometry"
    kd = d_max - d_min + 1
    pad_lo = -d_min
    pad_hi_r = n_r + d_max - H
    pad_hi_c = n_c + d_max - W
    assert pad_hi_r >= 0 and pad_hi_c >= 0, "unsupported transposed-conv geometry"

    w_oc = jnp.transpose(w_t, (1, 0, 2, 3))             # (C_out, C_in, k, k)
    zeros_cc = jnp.zeros((C_out, C_in), w_oc.dtype)

    # Fused weight: (s*s*C_out, C_in*kd*kd), rows phase-major, K order (ci,ki,kj)
    # matching the im2col row layout; missing taps are zero columns.
    phase_mats = []
    for pi in range(s):
        for pj in range(s):
            cols = []
            for ki in range(kd):
                dr = ki + d_min
                for kj in range(kd):
                    dc = kj + d_min
                    if dr in taps[pi] and dc in taps[pj]:
                        cols.append(w_oc[:, :, taps[pi][dr], taps[pj][dc]])
                    else:
                        cols.append(zeros_cc)
            wp = jnp.stack(cols, axis=2)                 # (C_out, C_in, kd*kd)
            phase_mats.append(wp.reshape(C_out, C_in * kd * kd))
    wmat = jnp.concatenate(phase_mats, axis=0)           # (s*s*C_out, K)
    bias_f = jnp.tile(bias, s * s)

    # One shared stride-1 im2col feeds every phase.
    col, Ho, Wo = _im2col(x, kd, kd, 1, pad_lo, pad_hi_r, pad_lo, pad_hi_c)
    assert Ho == n_r and Wo == n_c

    out = _pallas_matmul_bias(wmat, col, bias_f, relu, out_dtype=out_dtype)
    # (s*s*C_out, B*n_r*n_c) -> interleave the phases in one contiguous pass.
    out = out.reshape(s, s, C_out, B, n_r, n_c)
    out = jnp.transpose(out, (2, 3, 4, 0, 5, 1))         # (C,B,n_r,pi,n_c,pj)
    return out.reshape(C_out, B, H_out, W_out)


# ----------------------------------------------------------------------------
# Model: parameters + forward
# ----------------------------------------------------------------------------
IN_CH = 3      # image channels
HID_CH = 8     # analysis/synthesis hidden channels
LAT_CH = 8     # latent channels
K = 5          # kernel size


def init_params(key):
    ks = jax.random.split(key, 6)

    def conv_w(k_, shape):
        fan_in = shape[1] * shape[2] * shape[3]
        return jax.random.normal(k_, shape, jnp.float32) / math.sqrt(fan_in)

    return {
        # Analysis (Conv2d weights: (C_out, C_in, k, k))
        "a_w1": conv_w(ks[0], (HID_CH, IN_CH, K, K)),
        "a_b1": jnp.zeros((HID_CH,), jnp.float32),
        "a_w2": conv_w(ks[1], (LAT_CH, HID_CH, K, K)),
        "a_b2": jnp.zeros((LAT_CH,), jnp.float32),
        # Synthesis (ConvTranspose2d weights: (C_in, C_out, k, k))
        "s_w1": conv_w(ks[2], (LAT_CH, HID_CH, K, K)),
        "s_b1": jnp.zeros((HID_CH,), jnp.float32),
        "s_w2": conv_w(ks[3], (HID_CH, IN_CH, K, K)),
        "s_b2": jnp.zeros((IN_CH,), jnp.float32),
        # Cumulative (per-latent-channel logistic CDF params)
        "cdf_a": 0.1 * jax.random.normal(ks[4], (LAT_CH, 1), jnp.float32),
        "cdf_b": 0.1 * jax.random.normal(ks[5], (LAT_CH, 1), jnp.float32),
    }


def compress_and_decompress(X, params, training=False, noise_key=None):
    # Module boundary: NCHW -> channel-major (C, B, H, W) slab; conv-path
    # activations travel as bf16 (MXU operands), latent kept f32.
    x = jnp.transpose(X, (1, 0, 2, 3)).astype(jnp.bfloat16)

    # ---- Analysis ----
    y = conv2d_cbhw(x, params["a_w1"], params["a_b1"], stride=2, pad=2,
                    relu=True, out_dtype=jnp.bfloat16)
    y = conv2d_cbhw(y, params["a_w2"], params["a_b2"], stride=2, pad=2,
                    relu=False, out_dtype=jnp.float32)      # latent in f32

    # ---- Quantization ----
    if training:
        noise = jax.random.uniform(noise_key, y.shape, jnp.float32, -0.5, 0.5)
        q = y + noise
    else:
        q = jnp.round(y)

    # ---- Synthesis (fused phase-split transposed convs) ----
    q_syn = q.astype(jnp.bfloat16)       # rounded integers: exact in bf16 here
    xh = conv_transpose2d_cbhw(q_syn, params["s_w1"], params["s_b1"],
                               stride=2, pad=2, out_pad=1, relu=True,
                               out_dtype=jnp.bfloat16)
    xh = conv_transpose2d_cbhw(xh, params["s_w2"], params["s_b2"],
                               stride=2, pad=2, out_pad=1, relu=False,
                               out_dtype=jnp.float32)
    X_hat = jnp.transpose(xh, (1, 0, 2, 3))             # back to NCHW

    # ---- Rate (tiled Pallas elementwise + scratch-accumulated reduction) ----
    C, B, Hy, Wy = q.shape
    q_cm = q.reshape(C, B * Hy * Wy)                    # free: channels already major
    sa = jax.nn.softplus(params["cdf_a"])               # hoisted per-channel scale
    bits = _pallas_rate_bits(q_cm, sa, params["cdf_b"])
    rate = bits / (X.shape[0] * X.shape[2] * X.shape[3])

    return X_hat, rate


# ----------------------------------------------------------------------------
if __name__ == "__main__":
    key = jax.random.PRNGKey(0)
    kx, kp = jax.random.split(key)

    X = jax.random.normal(kx, (2, IN_CH, 16, 16), jnp.float32)
    params = init_params(kp)

    fwd = jax.jit(lambda xin: compress_and_decompress(xin, params, training=False))
    X_hat, rate = fwd(X)
    jax.block_until_ready((X_hat, rate))

    assert X_hat.shape == X.shape, (X_hat.shape, X.shape)
    assert rate.shape == ()
    assert bool(jnp.isfinite(rate))
    print("KERNEL_OK")
</pallas_src>

<mosaic_0001>
module attributes {stable_mosaic.version = 11 : i64} {
  func.func @_matmul_bias_kernel(%arg0: i32, %arg1: memref<16x75xbf16, #tpu.memory_space<vmem>>, %arg2: memref<75x128xbf16, #tpu.memory_space<vmem>>, %arg3: memref<16x1xf32, #tpu.memory_space<vmem>>, %arg4: memref<16x128xbf16, #tpu.memory_space<vmem>>) attributes {dimension_semantics = [#tpu.dimension_semantics<parallel>], iteration_bounds = array<i64: 1>, scalar_prefetch = 0 : i64, scratch_operands = 0 : i64, tpu.core_type = #tpu.core_type<tc>, window_params = [{pipeline_mode = #tpu.pipeline_mode<synchronous>, transform_indices = @transform_0, window_bounds = array<i64: 16, 75>}, {transform_indices = @transform_1, window_bounds = array<i64: 75, 128>}, {pipeline_mode = #tpu.pipeline_mode<synchronous>, transform_indices = @transform_2, window_bounds = array<i64: 16, 1>}, {transform_indices = @transform_3, window_bounds = array<i64: 16, 128>}]} {
    %c0 = arith.constant 0 : index
    %c0_0 = arith.constant 0 : index
    %0 = vector.load %arg1[%c0, %c0_0] : memref<16x75xbf16, #tpu.memory_space<vmem>>, vector<16x75xbf16>
    %c0_1 = arith.constant 0 : index
    %c0_2 = arith.constant 0 : index
    %1 = vector.load %arg2[%c0_1, %c0_2] : memref<75x128xbf16, #tpu.memory_space<vmem>>, vector<75x128xbf16>
    %cst = arith.constant dense<0.000000e+00> : vector<16x128xf32>
    %2 = tpu.matmul %0, %1, %cst {dimension_numbers = #tpu.dot_dimension_numbers<[1], [0], [0], [1], [0, 0, 1, 1], [], []>} : vector<16x75xbf16>, vector<75x128xbf16>, vector<16x128xf32> -> vector<16x128xf32>
    %c0_3 = arith.constant 0 : index
    %c0_4 = arith.constant 0 : index
    %3 = vector.load %arg3[%c0_3, %c0_4] : memref<16x1xf32, #tpu.memory_space<vmem>>, vector<16x1xf32>
    %4 = vector.broadcast %3 : vector<16x1xf32> to vector<16x128xf32>
    %5 = arith.addf %2, %4 : vector<16x128xf32>
    %cst_5 = arith.constant 0.000000e+00 : f32
    %6 = vector.broadcast %cst_5 : f32 to vector<16x128xf32>
    %7 = arith.maximumf %5, %6 : vector<16x128xf32>
    %8 = arith.truncf %7 : vector<16x128xf32> to vector<16x128xbf16>
    %c0_6 = arith.constant 0 : index
    %c0_7 = arith.constant 0 : index
    %9 = vector.load %arg4[%c0_6, %c0_7] : memref<16x128xbf16, #tpu.memory_space<vmem>>, vector<16x128xbf16>
    tpu.vector_store %arg4[%c0_6, %c0_7], %8 {strides = array<i32>} : memref<16x128xbf16, #tpu.memory_space<vmem>>, vector<16x128xbf16>,
    return
  }
  func.func @transform_0(%arg0: i32) -> (i32, i32) {
    %c0_i32 = arith.constant 0 : i32
    %c0_i32_0 = arith.constant 0 : i32
    %c0_i32_1 = arith.constant 0 : i32
    return %c0_i32, %c0_i32_0 : i32, i32
  }
  func.func @transform_1(%arg0: i32) -> (i32, i32) {
    %c0_i32 = arith.constant 0 : i32
    %c0_i32_0 = arith.constant 0 : i32
    return %c0_i32, %arg0 : i32, i32
  }
  func.func @transform_2(%arg0: i32) -> (i32, i32) {
    %c0_i32 = arith.constant 0 : i32
    %c0_i32_0 = arith.constant 0 : i32
    %c0_i32_1 = arith.constant 0 : i32
    return %c0_i32, %c0_i32_0 : i32, i32
  }
  func.func @transform_3(%arg0: i32) -> (i32, i32) {
    %c0_i32 = arith.constant 0 : i32
    %c0_i32_0 = arith.constant 0 : i32
    return %c0_i32, %arg0 : i32, i32
  }
}

module attributes {stable_mosaic.version = 11 : i64} {
  func.func @_matmul_bias_kernel(%arg0: i32, %arg1: memref<16x200xbf16, #tpu.memory_space<vmem>>, %arg2: memref<200x128xbf16, #tpu.memory_space<vmem>>, %arg3: memref<16x1xf32, #tpu.memory_space<vmem>>, %arg4: memref<16x128xf32, #tpu.memory_space<vmem>>) attributes {dimension_semantics = [#tpu.dimension_semantics<parallel>], iteration_bounds = array<i64: 1>, scalar_prefetch = 0 : i64, scratch_operands = 0 : i64, tpu.core_type = #tpu.core_type<tc>, window_params = [{pipeline_mode = #tpu.pipeline_mode<synchronous>, transform_indices = @transform_0, window_bounds = array<i64: 16, 200>}, {transform_indices = @transform_1, window_bounds = array<i64: 200, 128>}, {pipeline_mode = #tpu.pipeline_mode<synchronous>, transform_indices = @transform_2, window_bounds = array<i64: 16, 1>}, {transform_indices = @transform_3, window_bounds = array<i64: 16, 128>}]} {
    %c0 = arith.constant 0 : index
    %c0_0 = arith.constant 0 : index
    %0 = vector.load %arg1[%c0, %c0_0] : memref<16x200xbf16, #tpu.memory_space<vmem>>, vector<16x200xbf16>
    %c0_1 = arith.constant 0 : index
    %c0_2 = arith.constant 0 : index
    %1 = vector.load %arg2[%c0_1, %c0_2] : memref<200x128xbf16, #tpu.memory_space<vmem>>, vector<200x128xbf16>
    %cst = arith.constant dense<0.000000e+00> : vector<16x128xf32>
    %2 = tpu.matmul %0, %1, %cst {dimension_numbers = #tpu.dot_dimension_numbers<[1], [0], [0], [1], [0, 0, 1, 1], [], []>} : vector<16x200xbf16>, vector<200x128xbf16>, vector<16x128xf32> -> vector<16x128xf32>
    %c0_3 = arith.constant 0 : index
    %c0_4 = arith.constant 0 : index
    %3 = vector.load %arg3[%c0_3, %c0_4] : memref<16x1xf32, #tpu.memory_space<vmem>>, vector<16x1xf32>
    %4 = vector.broadcast %3 : vector<16x1xf32> to vector<16x128xf32>
    %5 = arith.addf %2, %4 : vector<16x128xf32>
    %c0_5 = arith.constant 0 : index
    %c0_6 = arith.constant 0 : index
    %6 = vector.load %arg4[%c0_5, %c0_6] : memref<16x128xf32, #tpu.memory_space<vmem>>, vector<16x128xf32>
    tpu.vector_store %arg4[%c0_5, %c0_6], %5 {strides = array<i32>} : memref<16x128xf32, #tpu.memory_space<vmem>>, vector<16x128xf32>,
    return
  }
  func.func @transform_0(%arg0: i32) -> (i32, i32) {
    %c0_i32 = arith.constant 0 : i32
    %c0_i32_0 = arith.constant 0 : i32
    %c0_i32_1 = arith.constant 0 : i32
    return %c0_i32, %c0_i32_0 : i32, i32
  }
  func.func @transform_1(%arg0: i32) -> (i32, i32) {
    %c0_i32 = arith.constant 0 : i32
    %c0_i32_0 = arith.constant 0 : i32
    return %c0_i32, %arg0 : i32, i32
  }
  func.func @transform_2(%arg0: i32) -> (i32, i32) {
    %c0_i32 = arith.constant 0 : i32
    %c0_i32_0 = arith.constant 0 : i32
    %c0_i32_1 = arith.constant 0 : i32
    return %c0_i32, %c0_i32_0 : i32, i32
  }
  func.func @transform_3(%arg0: i32) -> (i32, i32) {
    %c0_i32 = arith.constant 0 : i32
    %c0_i32_0 = arith.constant 0 : i32
    return %c0_i32, %arg0 : i32, i32
  }
}

module attributes {stable_mosaic.version = 11 : i64} {
  func.func @_matmul_bias_kernel(%arg0: i32, %arg1: memref<32x72xbf16, #tpu.memory_space<vmem>>, %arg2: memref<72x128xbf16, #tpu.memory_space<vmem>>, %arg3: memref<32x1xf32, #tpu.memory_space<vmem>>, %arg4: memref<32x128xbf16, #tpu.memory_space<vmem>>) attributes {dimension_semantics = [#tpu.dimension_semantics<parallel>], iteration_bounds = array<i64: 1>, scalar_prefetch = 0 : i64, scratch_operands = 0 : i64, tpu.core_type = #tpu.core_type<tc>, window_params = [{pipeline_mode = #tpu.pipeline_mode<synchronous>, transform_indices = @transform_0, window_bounds = array<i64: 32, 72>}, {transform_indices = @transform_1, window_bounds = array<i64: 72, 128>}, {pipeline_mode = #tpu.pipeline_mode<synchronous>, transform_indices = @transform_2, window_bounds = array<i64: 32, 1>}, {transform_indices = @transform_3, window_bounds = array<i64: 32, 128>}]} {
    %c0 = arith.constant 0 : index
    %c0_0 = arith.constant 0 : index
    %0 = vector.load %arg1[%c0, %c0_0] : memref<32x72xbf16, #tpu.memory_space<vmem>>, vector<32x72xbf16>
    %c0_1 = arith.constant 0 : index
    %c0_2 = arith.constant 0 : index
    %1 = vector.load %arg2[%c0_1, %c0_2] : memref<72x128xbf16, #tpu.memory_space<vmem>>, vector<72x128xbf16>
    %cst = arith.constant dense<0.000000e+00> : vector<32x128xf32>
    %2 = tpu.matmul %0, %1, %cst {dimension_numbers = #tpu.dot_dimension_numbers<[1], [0], [0], [1], [0, 0, 1, 1], [], []>} : vector<32x72xbf16>, vector<72x128xbf16>, vector<32x128xf32> -> vector<32x128xf32>
    %c0_3 = arith.constant 0 : index
    %c0_4 = arith.constant 0 : index
    %3 = vector.load %arg3[%c0_3, %c0_4] : memref<32x1xf32, #tpu.memory_space<vmem>>, vector<32x1xf32>
    %4 = vector.broadcast %3 : vector<32x1xf32> to vector<32x128xf32>
    %5 = arith.addf %2, %4 : vector<32x128xf32>
    %cst_5 = arith.constant 0.000000e+00 : f32
    %6 = vector.broadcast %cst_5 : f32 to vector<32x128xf32>
    %7 = arith.maximumf %5, %6 : vector<32x128xf32>
    %8 = arith.truncf %7 : vector<32x128xf32> to vector<32x128xbf16>
    %c0_6 = arith.constant 0 : index
    %c0_7 = arith.constant 0 : index
    %9 = vector.load %arg4[%c0_6, %c0_7] : memref<32x128xbf16, #tpu.memory_space<vmem>>, vector<32x128xbf16>
    tpu.vector_store %arg4[%c0_6, %c0_7], %8 {strides = array<i32>} : memref<32x128xbf16, #tpu.memory_space<vmem>>, vector<32x128xbf16>,
    return
  }
  func.func @transform_0(%arg0: i32) -> (i32, i32) {
    %c0_i32 = arith.constant 0 : i32
    %c0_i32_0 = arith.constant 0 : i32
    %c0_i32_1 = arith.constant 0 : i32
    return %c0_i32, %c0_i32_0 : i32, i32
  }
  func.func @transform_1(%arg0: i32) -> (i32, i32) {
    %c0_i32 = arith.constant 0 : i32
    %c0_i32_0 = arith.constant 0 : i32
    return %c0_i32, %arg0 : i32, i32
  }
  func.func @transform_2(%arg0: i32) -> (i32, i32) {
    %c0_i32 = arith.constant 0 : i32
    %c0_i32_0 = arith.constant 0 : i32
    %c0_i32_1 = arith.constant 0 : i32
    return %c0_i32, %c0_i32_0 : i32, i32
  }
  func.func @transform_3(%arg0: i32) -> (i32, i32) {
    %c0_i32 = arith.constant 0 : i32
    %c0_i32_0 = arith.constant 0 : i32
    return %c0_i32, %arg0 : i32, i32
  }
}

module attributes {stable_mosaic.version = 11 : i64} {
  func.func @_matmul_bias_kernel(%arg0: i32, %arg1: memref<16x72xbf16, #tpu.memory_space<vmem>>, %arg2: memref<72x128xbf16, #tpu.memory_space<vmem>>, %arg3: memref<16x1xf32, #tpu.memory_space<vmem>>, %arg4: memref<16x128xf32, #tpu.memory_space<vmem>>) attributes {dimension_semantics = [#tpu.dimension_semantics<parallel>], iteration_bounds = array<i64: 1>, scalar_prefetch = 0 : i64, scratch_operands = 0 : i64, tpu.core_type = #tpu.core_type<tc>, window_params = [{pipeline_mode = #tpu.pipeline_mode<synchronous>, transform_indices = @transform_0, window_bounds = array<i64: 16, 72>}, {transform_indices = @transform_1, window_bounds = array<i64: 72, 128>}, {pipeline_mode = #tpu.pipeline_mode<synchronous>, transform_indices = @transform_2, window_bounds = array<i64: 16, 1>}, {transform_indices = @transform_3, window_bounds = array<i64: 16, 128>}]} {
    %c0 = arith.constant 0 : index
    %c0_0 = arith.constant 0 : index
    %0 = vector.load %arg1[%c0, %c0_0] : memref<16x72xbf16, #tpu.memory_space<vmem>>, vector<16x72xbf16>
    %c0_1 = arith.constant 0 : index
    %c0_2 = arith.constant 0 : index
    %1 = vector.load %arg2[%c0_1, %c0_2] : memref<72x128xbf16, #tpu.memory_space<vmem>>, vector<72x128xbf16>
    %cst = arith.constant dense<0.000000e+00> : vector<16x128xf32>
    %2 = tpu.matmul %0, %1, %cst {dimension_numbers = #tpu.dot_dimension_numbers<[1], [0], [0], [1], [0, 0, 1, 1], [], []>} : vector<16x72xbf16>, vector<72x128xbf16>, vector<16x128xf32> -> vector<16x128xf32>
    %c0_3 = arith.constant 0 : index
    %c0_4 = arith.constant 0 : index
    %3 = vector.load %arg3[%c0_3, %c0_4] : memref<16x1xf32, #tpu.memory_space<vmem>>, vector<16x1xf32>
    %4 = vector.broadcast %3 : vector<16x1xf32> to vector<16x128xf32>
    %5 = arith.addf %2, %4 : vector<16x128xf32>
    %c0_5 = arith.constant 0 : index
    %c0_6 = arith.constant 0 : index
    %6 = vector.load %arg4[%c0_5, %c0_6] : memref<16x128xf32, #tpu.memory_space<vmem>>, vector<16x128xf32>
    tpu.vector_store %arg4[%c0_5, %c0_6], %5 {strides = array<i32>} : memref<16x128xf32, #tpu.memory_space<vmem>>, vector<16x128xf32>,
    return
  }
  func.func @transform_0(%arg0: i32) -> (i32, i32) {
    %c0_i32 = arith.constant 0 : i32
    %c0_i32_0 = arith.constant 0 : i32
    %c0_i32_1 = arith.constant 0 : i32
    return %c0_i32, %c0_i32_0 : i32, i32
  }
  func.func @transform_1(%arg0: i32) -> (i32, i32) {
    %c0_i32 = arith.constant 0 : i32
    %c0_i32_0 = arith.constant 0 : i32
    return %c0_i32, %arg0 : i32, i32
  }
  func.func @transform_2(%arg0: i32) -> (i32, i32) {
    %c0_i32 = arith.constant 0 : i32
    %c0_i32_0 = arith.constant 0 : i32
    %c0_i32_1 = arith.constant 0 : i32
    return %c0_i32, %c0_i32_0 : i32, i32
  }
  func.func @transform_3(%arg0: i32) -> (i32, i32) {
    %c0_i32 = arith.constant 0 : i32
    %c0_i32_0 = arith.constant 0 : i32
    return %c0_i32, %arg0 : i32, i32
  }
}

module attributes {stable_mosaic.version = 11 : i64} {
  func.func @_rate_bits_kernel(%arg0: i32, %arg1: memref<8x128xf32, #tpu.memory_space<vmem>>, %arg2: memref<8x1xf32, #tpu.memory_space<vmem>>, %arg3: memref<8x1xf32, #tpu.memory_space<vmem>>, %arg4: memref<1x1xf32, #tpu.memory_space<vmem>>, %arg5: memref<8x128xf32, #tpu.memory_space<vmem>>) attributes {dimension_semantics = [#tpu.dimension_semantics<arbitrary>], iteration_bounds = array<i64: 1>, scalar_prefetch = 0 : i64, scratch_operands = 1 : i64, tpu.core_type = #tpu.core_type<tc>, window_params = [{transform_indices = @transform_0, window_bounds = array<i64: 8, 128>}, {pipeline_mode = #tpu.pipeline_mode<synchronous>, transform_indices = @transform_1, window_bounds = array<i64: 8, 1>}, {pipeline_mode = #tpu.pipeline_mode<synchronous>, transform_indices = @transform_2, window_bounds = array<i64: 8, 1>}, {pipeline_mode = #tpu.pipeline_mode<synchronous>, transform_indices = @transform_3, window_bounds = array<i64: 1, 1>}]} {
    %c0_i32 = arith.constant 0 : i32
    %0 = arith.cmpi eq, %arg0, %c0_i32 : i32
    %1 = arith.extui %0 : i1 to i32
    %c0_i32_0 = arith.constant 0 : i32
    %2 = arith.cmpi ne, %1, %c0_i32_0 : i32
    scf.if %2 {
      %cst_17 = arith.constant 0.000000e+00 : f32
      %40 = vector.broadcast %cst_17 : f32 to vector<8x128xf32>
      %c0_18 = arith.constant 0 : index
      %c0_19 = arith.constant 0 : index
      %41 = vector.load %arg5[%c0_18, %c0_19] : memref<8x128xf32, #tpu.memory_space<vmem>>, vector<8x128xf32>
      tpu.vector_store %arg5[%c0_18, %c0_19], %40 {strides = array<i32>} : memref<8x128xf32, #tpu.memory_space<vmem>>, vector<8x128xf32>,
    } else {
    }
    %c0 = arith.constant 0 : index
    %c0_1 = arith.constant 0 : index
    %3 = vector.load %arg1[%c0, %c0_1] : memref<8x128xf32, #tpu.memory_space<vmem>>, vector<8x128xf32>
    %c0_2 = arith.constant 0 : index
    %c0_3 = arith.constant 0 : index
    %4 = vector.load %arg2[%c0_2, %c0_3] : memref<8x1xf32, #tpu.memory_space<vmem>>, vector<8x1xf32>
    %c0_4 = arith.constant 0 : index
    %c0_5 = arith.constant 0 : index
    %5 = vector.load %arg3[%c0_4, %c0_5] : memref<8x1xf32, #tpu.memory_space<vmem>>, vector<8x1xf32>
    %cst = arith.constant 5.000000e-01 : f32
    %6 = vector.broadcast %cst : f32 to vector<8x128xf32>
    %7 = arith.addf %3, %6 : vector<8x128xf32>
    %8 = vector.broadcast %4 : vector<8x1xf32> to vector<8x128xf32>
    %9 = arith.mulf %8, %7 : vector<8x128xf32>
    %10 = vector.broadcast %5 : vector<8x1xf32> to vector<8x128xf32>
    %11 = arith.addf %9, %10 : vector<8x128xf32>
    %12 = arith.negf %11 : vector<8x128xf32>
    %13 = math.exp %12 : vector<8x128xf32>
    %cst_6 = arith.constant 1.000000e+00 : f32
    %14 = vector.broadcast %cst_6 : f32 to vector<8x128xf32>
    %15 = arith.addf %14, %13 : vector<8x128xf32>
    %16 = arith.divf %14, %15 : vector<8x128xf32>
    %cst_7 = arith.constant 5.000000e-01 : f32
    %17 = vector.broadcast %cst_7 : f32 to vector<8x128xf32>
    %18 = arith.subf %3, %17 : vector<8x128xf32>
    %19 = vector.broadcast %4 : vector<8x1xf32> to vector<8x128xf32>
    %20 = arith.mulf %19, %18 : vector<8x128xf32>
    %21 = vector.broadcast %5 : vector<8x1xf32> to vector<8x128xf32>
    %22 = arith.addf %20, %21 : vector<8x128xf32>
    %23 = arith.negf %22 : vector<8x128xf32>
    %24 = math.exp %23 : vector<8x128xf32>
    %cst_8 = arith.constant 1.000000e+00 : f32
    %25 = vector.broadcast %cst_8 : f32 to vector<8x128xf32>
    %26 = arith.addf %25, %24 : vector<8x128xf32>
    %27 = arith.divf %25, %26 : vector<8x128xf32>
    %28 = arith.subf %16, %27 : vector<8x128xf32>
    %cst_9 = arith.constant 9.99999971E-10 : f32
    %29 = vector.broadcast %cst_9 : f32 to vector<8x128xf32>
    %30 = arith.maximumf %28, %29 : vector<8x128xf32>
    %c0_10 = arith.constant 0 : index
    %c0_11 = arith.constant 0 : index
    %31 = vector.load %arg5[%c0_10, %c0_11] : memref<8x128xf32, #tpu.memory_space<vmem>>, vector<8x128xf32>
    %32 = math.log %30 : vector<8x128xf32>
    %cst_12 = arith.constant -1.44269502 : f32
    %33 = vector.broadcast %cst_12 : f32 to vector<8x128xf32>
    %34 = arith.mulf %32, %33 : vector<8x128xf32>
    %35 = arith.addf %31, %34 : vector<8x128xf32>
    %c0_13 = arith.constant 0 : index
    %c0_14 = arith.constant 0 : index
    %36 = vector.load %arg5[%c0_13, %c0_14] : memref<8x128xf32, #tpu.memory_space<vmem>>, vector<8x128xf32>
    tpu.vector_store %arg5[%c0_13, %c0_14], %35 {strides = array<i32>} : memref<8x128xf32, #tpu.memory_space<vmem>>, vector<8x128xf32>,
    %c0_i32_15 = arith.constant 0 : i32
    %37 = arith.cmpi eq, %arg0, %c0_i32_15 : i32
    %38 = arith.extui %37 : i1 to i32
    %c0_i32_16 = arith.constant 0 : i32
    %39 = arith.cmpi ne, %38, %c0_i32_16 : i32
    scf.if %39 {
      %c0_17 = arith.constant 0 : index
      %c0_18 = arith.constant 0 : index
      %40 = vector.load %arg5[%c0_17, %c0_18] : memref<8x128xf32, #tpu.memory_space<vmem>>, vector<8x128xf32>
      %41 = vector.shape_cast %40 : vector<8x128xf32> to vector<1x8x128xf32>
      %cst_19 = arith.constant dense<0.000000e+00> : vector<1xf32>
      %42 = vector.multi_reduction <add>, %41, %cst_19 [1, 2] : vector<1x8x128xf32> to vector<1xf32>
      %43 = vector.shape_cast %42 : vector<1xf32> to vector<1x1x1xf32>
      %44 = vector.extract %43[0, 0, 0] : f32 from vector<1x1x1xf32>
      %45 = vector.broadcast %44 : f32 to vector<1x1xf32>
      %c0_20 = arith.constant 0 : index
      %c0_21 = arith.constant 0 : index
      %46 = vector.load %arg4[%c0_20, %c0_21] : memref<1x1xf32, #tpu.memory_space<vmem>>, vector<1x1xf32>
      tpu.vector_store %arg4[%c0_20, %c0_21], %45 {strides = array<i32>} : memref<1x1xf32, #tpu.memory_space<vmem>>, vector<1x1xf32>,
    } else {
    }
    return
  }
  func.func @transform_0(%arg0: i32) -> (i32, i32) {
    %c0_i32 = arith.constant 0 : i32
    %c0_i32_0 = arith.constant 0 : i32
    return %c0_i32, %arg0 : i32, i32
  }
  func.func @transform_1(%arg0: i32) -> (i32, i32) {
    %c0_i32 = arith.constant 0 : i32
    %c0_i32_0 = arith.constant 0 : i32
    %c0_i32_1 = arith.constant 0 : i32
    return %c0_i32, %c0_i32_0 : i32, i32
  }
  func.func @transform_2(%arg0: i32) -> (i32, i32) {
    %c0_i32 = arith.constant 0 : i32
    %c0_i32_0 = arith.constant 0 : i32
    %c0_i32_1 = arith.constant 0 : i32
    return %c0_i32, %c0_i32_0 : i32, i32
  }
  func.func @transform_3(%arg0: i32) -> (i32, i32) {
    %c0_i32 = arith.constant 0 : i32
    %c0_i32_0 = arith.constant 0 : i32
    %c0_i32_1 = arith.constant 0 : i32
    return %c0_i32, %c0_i32_0 : i32, i32
  }
}

</mosaic_0001>

<llo_original>
// kernel: _lambda_.5
$region0: #{_lambda_.5}
  #allocation0 [shape = 'u32[]', space=smem, size = 0x4, offset = 0x4, fixed_abs, tag = 'smem constant byte address 0x4 - core index']
  #allocation1 [shape = 'u32[144,128]{1,0:T(1,128)}', space=vmem, size = 0x12000, scoped, tag = 'internal scratch']
  %s0 = inlined_call_operand.vmem [shape: bf16[16,75], index: 0, kind: input, shape index: {}]
  %s1 = inlined_call_operand.vmem [shape: bf16[75,128], index: 1, kind: input, shape index: {}]
  %s2 = inlined_call_operand.vmem [shape: f32[16,1], index: 2, kind: input, shape index: {}]
  %s3 = inlined_call_operand.vmem [shape: bf16[16,128], index: 3, kind: output, shape index: {}]
  %s4 = sld [smem:[#allocation0]]
  $region22: #{_lambda_.5} parent=0
    _
  %s6 = ssub.s32 1, %s4
  %s7 = scalar_select 0, %s6, %s4
  // Predicated region
  $region2: #{_lambda_.5} parent=0 // pred_check
    _
  $region3: #{_lambda_.5} parent=0 // pred_check_branch
    %9 = sbr.rel (0) target = $region5
  $region4: #{_lambda_.5} parent=0 // pred_region
    _
  $region5: #{_lambda_.5} parent=0 // pred_fallthru
    _
  // Predicated region
  $region6: #{_lambda_.5} parent=0 // pred_check
    _
  $region7: #{_lambda_.5} parent=0 // pred_check_branch
    %11 = sbr.rel (0) target = $region9
  $region8: #{_lambda_.5} parent=0 // pred_region
    _
  $region9: #{_lambda_.5} parent=0 // pred_fallthru
    _
  // Predicated region
  $region10: #{_lambda_.5} parent=0 // pred_check
    _
  $region11: #{_lambda_.5} parent=0 // pred_check_branch
    %13 = sbr.rel (0) target = $region13
  $region12: #{_lambda_.5} parent=0 // pred_region
    _
  $region13: #{_lambda_.5} parent=0 // pred_fallthru
    _
  %v15 = vld [vmem:[%s0] sm:$0xf]
  %v16 = vld [vmem:[%s0 + $0x4] sm:$0xf]
  %v17 = vld [vmem:[%s1] sm:$0xf]
  %v18 = vld [vmem:[%s1 + $0x4] sm:$0xf]
  %v19 = vld [vmem:[%s1 + $0x8] sm:$0xf]
  %v20 = vld [vmem:[%s1 + $0xc] sm:$0xf]
  %v21 = vld [vmem:[%s1 + $0x10] sm:$0xf]
  %v22 = vld [vmem:[%s1 + $0x14] sm:$0xf]
  %v23 = vld [vmem:[%s1 + $0x18] sm:$0xf]
  %v24 = vld [vmem:[%s1 + $0x1c] sm:$0xf]
  %v25 = vld [vmem:[%s1 + $0x20] sm:$0xf]
  %v26 = vld [vmem:[%s1 + $0x24] sm:$0x3]
  %v27 = vld [vmem:[%s2] sm:$0xff]
  %v28 = vld [vmem:[%s2 + $0x8] sm:$0xff]
  %30 = vset.pattern.permute.xlu0 0
  %31 = vperm.xlu0 %30, %v27
  %v32 = vpop.permute.xlu0 %31
  %35 = vset.pattern.permute.xlu0 0
  %36 = vperm.xlu0 %35, %v28
  %v37 = vpop.permute.xlu0 %36
  %v41 = vunpack.c.l.b16 %v15
  %v42 = vunpack.c.l.b16 %v16
  %v43 = vpack.c.b16 %v42, %v41
  %v54 = vunpack.c.l.b16 %v17
  %v55 = vunpack.c.l.b16 %v18
  %v56 = vunpack.c.l.b16 %v19
  %v57 = vunpack.c.l.b16 %v20
  %v58 = vunpack.c.l.b16 %v21
  %v59 = vunpack.c.l.b16 %v22
  %v60 = vunpack.c.l.b16 %v23
  %v61 = vunpack.c.l.b16 %v24
  %v62 = vunpack.c.l.b16 %v25
  %v63 = vunpack.c.l.b16 %v26
  %v64 = vpack.c.b16 %v55, %v54
  %v65 = vpack.c.b16 %v57, %v56
  %v66 = vpack.c.b16 %v59, %v58
  %v67 = vpack.c.b16 %v61, %v60
  %v68 = vpack.c.b16 %v63, %v62
  %vm73 = vcmask 613376
  %v75 = vsel %vm73, %v43, 0
  %vm77 = vcmask 1044480
  %vm78 = vcmask 1045504
  %v79 = vsel %vm77, 4294967295, 65535
  %v80 = vsel %vm78, %v79, 0
  %v82 = vand.u32 %v68, %v80
  %84 = vmatprep.subr.bf16.mxu0 0
  %85 = vmatpush1.bf16.msra.mxu0 0
  %86 = vmatprep.subr.bf16.mxu0 0
  %87 = vmatpush1.bf16.msra.mxu0 0
  %88 = vmatprep.subr.bf16.mxu0 0
  %89 = vmatpush1.bf16.msra.mxu0 0
  %90 = vmatprep.subr.bf16.mxu0 0
  %91 = vmatpush1.bf16.msra.mxu0 %v82
  %92 = vmatprep.subr.bf16.mxu0 0
  %93 = vmatpush1.bf16.msra.mxu0 %v67
  %94 = vmatprep.subr.bf16.mxu0 0
  %95 = vmatpush1.bf16.msra.mxu0 %v66
  %96 = vmatprep.subr.bf16.mxu0 0
  %97 = vmatpush1.bf16.msra.mxu0 %v65
  %98 = vmatprep.subr.bf16.mxu0 0
  %99 = vmatpush1.bf16.msra.mxu0 %v64
  %100 = vmatprep.subr.bf16.mxu0 0
  %101 = vmatpush2.bf16.msra.mxu0 0
  %102 = vmatprep.subr.bf16.mxu0 0
  %103 = vmatpush2.bf16.msra.mxu0 0
  %104 = vmatprep.subr.bf16.mxu0 0
  %105 = vmatpush2.bf16.msra.mxu0 0
  %106 = vmatprep.subr.bf16.mxu0 0
  %107 = vmatpush2.bf16.msra.mxu0 0
  %108 = vmatprep.subr.bf16.mxu0 0
  %109 = vmatpush2.bf16.msra.mxu0 0
  %110 = vmatprep.subr.bf16.mxu0 0
  %111 = vmatpush2.bf16.msra.mxu0 0
  %112 = vmatprep.subr.bf16.mxu0 0
  %113 = vmatpush2.bf16.msra.mxu0 0
  %114 = vmatprep.subr.bf16.mxu0 0
  %115 = vmatpush2.bf16.msra.mxu0 0
  %116 = vmatprep.mubr.bf16.mxu0 0
  %117 = vmatmul.mubr.bf16.gmra.mxu0 %v75
  %v118 = vpop.f32.mrf.mxu0
  %v119 = vadd.f32 %v32, %v118
  %v120 = vpop.f32.mrf.mxu0
  %v121 = vpop.f32.mrf.mxu0
  %v122 = vadd.f32 %v37, %v121
  %v123 = vpop.f32.mrf.mxu0
  %124 = vdwg.mxu0
  %v125 = vmax.f32 %v119, 0.0
  %v126 = vmax.f32 %v122, 0.0
  %v127 = vpack.c.bf16 %v126, %v125
  %v129 = vunpack.c.l.b16 %v127
  %v130 = vunpack.c.h.b16 %v127
  %v131 = vpack.c.b16 %v129, %v129
  %v132 = vpack.c.b16 %v130, %v130
  %135 = vst [vmem:[%s3] sm:$0xf] %v131
  %136 = vst [vmem:[%s3 + $0x4] sm:$0xf] %v132
  // Predicated region
  $region14: #{_lambda_.5} parent=0 // pred_check
    _
  $region15: #{_lambda_.5} parent=0 // pred_check_branch
    %138 = sbr.rel (0) target = $region17
  $region16: #{_lambda_.5} parent=0 // pred_region
    _
  $region17: #{_lambda_.5} parent=0 // pred_fallthru
    _
  // Predicated region
  $region18: #{_lambda_.5} parent=0 // pred_check
    _
  $region19: #{_lambda_.5} parent=0 // pred_check_branch
    %140 = sbr.rel (0) target = $region21
  $region20: #{_lambda_.5} parent=0 // pred_region
    _
  $region21: #{_lambda_.5} parent=0 // pred_fallthru
    _

// kernel: _lambda_.6
$region0: #{_lambda_.6}
  #allocation0 [shape = 'u32[]', space=smem, size = 0x4, offset = 0x4, fixed_abs, tag = 'smem constant byte address 0x4 - core index']
  #allocation1 [shape = 'u32[144,128]{1,0:T(1,128)}', space=vmem, size = 0x12000, scoped, tag = 'internal scratch']
  %s0 = inlined_call_operand.vmem [shape: bf16[16,200], index: 0, kind: input, shape index: {}]
  %s1 = inlined_call_operand.vmem [shape: bf16[200,128], index: 1, kind: input, shape index: {}]
  %s2 = inlined_call_operand.vmem [shape: f32[16,1], index: 2, kind: input, shape index: {}]
  %s3 = inlined_call_operand.vmem [shape: f32[16,128], index: 3, kind: output, shape index: {}]
  %s4 = sld [smem:[#allocation0]]
  $region22: #{_lambda_.6} parent=0
    _
  %s6 = ssub.s32 1, %s4
  %s7 = scalar_select 0, %s6, %s4
  // Predicated region
  $region2: #{_lambda_.6} parent=0 // pred_check
    _
  $region3: #{_lambda_.6} parent=0 // pred_check_branch
    %9 = sbr.rel (0) target = $region5
  $region4: #{_lambda_.6} parent=0 // pred_region
    _
  $region5: #{_lambda_.6} parent=0 // pred_fallthru
    _
  // Predicated region
  $region6: #{_lambda_.6} parent=0 // pred_check
    _
  $region7: #{_lambda_.6} parent=0 // pred_check_branch
    %11 = sbr.rel (0) target = $region9
  $region8: #{_lambda_.6} parent=0 // pred_region
    _
  $region9: #{_lambda_.6} parent=0 // pred_fallthru
    _
  // Predicated region
  $region10: #{_lambda_.6} parent=0 // pred_check
    _
  $region11: #{_lambda_.6} parent=0 // pred_check_branch
    %13 = sbr.rel (0) target = $region13
  $region12: #{_lambda_.6} parent=0 // pred_region
    _
  $region13: #{_lambda_.6} parent=0 // pred_fallthru
    _
  %v15 = vld [vmem:[%s0] sm:$0xff]
  %v16 = vld [vmem:[%s0 + $0x8] sm:$0xff]
  %v17 = vld [vmem:[%s1] sm:$0xf]
  %v18 = vld [vmem:[%s1 + $0x4] sm:$0xf]
  %v19 = vld [vmem:[%s1 + $0x8] sm:$0xf]
  %v20 = vld [vmem:[%s1 + $0xc] sm:$0xf]
  %v21 = vld [vmem:[%s1 + $0x10] sm:$0xf]
  %v22 = vld [vmem:[%s1 + $0x14] sm:$0xf]
  %v23 = vld [vmem:[%s1 + $0x18] sm:$0xf]
  %v24 = vld [vmem:[%s1 + $0x1c] sm:$0xf]
  %v25 = vld [vmem:[%s1 + $0x20] sm:$0xf]
  %v26 = vld [vmem:[%s1 + $0x24] sm:$0xf]
  %v27 = vld [vmem:[%s1 + $0x28] sm:$0xf]
  %v28 = vld [vmem:[%s1 + $0x2c] sm:$0xf]
  %v29 = vld [vmem:[%s1 + $0x30] sm:$0xf]
  %v30 = vld [vmem:[%s1 + $0x34] sm:$0xf]
  %v31 = vld [vmem:[%s1 + $0x38] sm:$0xf]
  %v32 = vld [vmem:[%s1 + $0x3c] sm:$0xf]
  %v33 = vld [vmem:[%s1 + $0x40] sm:$0xf]
  %v34 = vld [vmem:[%s1 + $0x44] sm:$0xf]
  %v35 = vld [vmem:[%s1 + $0x48] sm:$0xf]
  %v36 = vld [vmem:[%s1 + $0x4c] sm:$0xf]
  %v37 = vld [vmem:[%s1 + $0x50] sm:$0xf]
  %v38 = vld [vmem:[%s1 + $0x54] sm:$0xf]
  %v39 = vld [vmem:[%s1 + $0x58] sm:$0xf]
  %v40 = vld [vmem:[%s1 + $0x5c] sm:$0xf]
  %v41 = vld [vmem:[%s1 + $0x60] sm:$0xf]
  %v42 = vld [vmem:[%s2] sm:$0xff]
  %v43 = vld [vmem:[%s2 + $0x8] sm:$0xff]
  %45 = vset.pattern.permute.xlu0 0
  %46 = vperm.xlu0 %45, %v42
  %v47 = vpop.permute.xlu0 %46
  %50 = vset.pattern.permute.xlu0 0
  %51 = vperm.xlu0 %50, %v43
  %v52 = vpop.permute.xlu0 %51
  %v56 = vunpack.c.l.b16 %v15
  %v57 = vunpack.c.h.b16 %v15
  %v58 = vunpack.c.l.b16 %v16
  %v59 = vunpack.c.h.b16 %v16
  %v60 = vpack.c.b16 %v58, %v56
  %v61 = vpack.c.b16 %v59, %v57
  %v88 = vunpack.c.l.b16 %v17
  %v89 = vunpack.c.l.b16 %v18
  %v90 = vunpack.c.l.b16 %v19
  %v91 = vunpack.c.l.b16 %v20
  %v92 = vunpack.c.l.b16 %v21
  %v93 = vunpack.c.l.b16 %v22
  %v94 = vunpack.c.l.b16 %v23
  %v95 = vunpack.c.l.b16 %v24
  %v96 = vunpack.c.l.b16 %v25
  %v97 = vunpack.c.l.b16 %v26
  %v98 = vunpack.c.l.b16 %v27
  %v99 = vunpack.c.l.b16 %v28
  %v100 = vunpack.c.l.b16 %v29
  %v101 = vunpack.c.l.b16 %v30
  %v102 = vunpack.c.l.b16 %v31
  %v103 = vunpack.c.l.b16 %v32
  %v104 = vunpack.c.l.b16 %v33
  %v105 = vunpack.c.l.b16 %v34
  %v106 = vunpack.c.l.b16 %v35
  %v107 = vunpack.c.l.b16 %v36
  %v108 = vunpack.c.l.b16 %v37
  %v109 = vunpack.c.l.b16 %v38
  %v110 = vunpack.c.l.b16 %v39
  %v111 = vunpack.c.l.b16 %v40
  %v112 = vunpack.c.l.b16 %v41
  %v113 = vpack.c.b16 %v89, %v88
  %v114 = vpack.c.b16 %v91, %v90
  %v115 = vpack.c.b16 %v93, %v92
  %v116 = vpack.c.b16 %v95, %v94
  %v117 = vpack.c.b16 %v97, %v96
  %v118 = vpack.c.b16 %v99, %v98
  %v119 = vpack.c.b16 %v101, %v100
  %v120 = vpack.c.b16 %v103, %v102
  %v121 = vpack.c.b16 %v105, %v104
  %v122 = vpack.c.b16 %v107, %v106
  %v123 = vpack.c.b16 %v109, %v108
  %v124 = vpack.c.b16 %v111, %v110
  %v125 = vpack.c.b16 %v112, %v112
  %vm138 = vcmask 588800
  %v140 = vsel %vm138, %v61, 0
  %vm142 = vcmask 1043456
  %v144 = vsel %vm142, %v125, 0
  %146 = vmatprep.subr.bf16.mxu0 0
  %147 = vmatpush1.bf16.msra.mxu0 %v120
  %148 = vmatprep.subr.bf16.mxu0 0
  %149 = vmatpush1.bf16.msra.mxu0 %v119
  %150 = vmatprep.subr.bf16.mxu0 0
  %151 = vmatpush1.bf16.msra.mxu0 %v118
  %152 = vmatprep.subr.bf16.mxu0 0
  %153 = vmatpush1.bf16.msra.mxu0 %v117
  %154 = vmatprep.subr.bf16.mxu0 0
  %155 = vmatpush1.bf16.msra.mxu0 %v116
  %156 = vmatprep.subr.bf16.mxu0 0
  %157 = vmatpush1.bf16.msra.mxu0 %v115
  %158 = vmatprep.subr.bf16.mxu0 0
  %159 = vmatpush1.bf16.msra.mxu0 %v114
  %160 = vmatprep.subr.bf16.mxu0 0
  %161 = vmatpush1.bf16.msra.mxu0 %v113
  %162 = vmatprep.subr.bf16.mxu0 0
  %163 = vmatpush2.bf16.msra.mxu0 0
  %164 = vmatprep.subr.bf16.mxu0 0
  %165 = vmatpush2.bf16.msra.mxu0 0
  %166 = vmatprep.subr.bf16.mxu0 0
  %167 = vmatpush2.bf16.msra.mxu0 0
  %168 = vmatprep.subr.bf16.mxu0 0
  %169 = vmatpush2.bf16.msra.mxu0 %v144
  %170 = vmatprep.subr.bf16.mxu0 0
  %171 = vmatpush2.bf16.msra.mxu0 %v124
  %172 = vmatprep.subr.bf16.mxu0 0
  %173 = vmatpush2.bf16.msra.mxu0 %v123
  %174 = vmatprep.subr.bf16.mxu0 0
  %175 = vmatpush2.bf16.msra.mxu0 %v122
  %176 = vmatprep.subr.bf16.mxu0 0
  %177 = vmatpush2.bf16.msra.mxu0 %v121
  %178 = vmatprep.mubr.bf16.mxu0 %v140
  %179 = vmatmul.mubr.bf16.gmra.mxu0 %v60
  %v180 = vpop.f32.mrf.mxu0
  %v181 = vadd.f32 %v47, %v180
  %v182 = vpop.f32.mrf.mxu0
  %v183 = vpop.f32.mrf.mxu0
  %v184 = vadd.f32 %v52, %v183
  %v185 = vpop.f32.mrf.mxu0
  %186 = vdwg.mxu0
  %187 = vst [vmem:[%s3] sm:$0xff] %v181
  %188 = vst [vmem:[%s3 + $0x8] sm:$0xff] %v184
  // Predicated region
  $region14: #{_lambda_.6} parent=0 // pred_check
    _
  $region15: #{_lambda_.6} parent=0 // pred_check_branch
    %190 = sbr.rel (0) target = $region17
  $region16: #{_lambda_.6} parent=0 // pred_region
    _
  $region17: #{_lambda_.6} parent=0 // pred_fallthru
    _
  // Predicated region
  $region18: #{_lambda_.6} parent=0 // pred_check
    _
  $region19: #{_lambda_.6} parent=0 // pred_check_branch
    %192 = sbr.rel (0) target = $region21
  $region20: #{_lambda_.6} parent=0 // pred_region
    _
  $region21: #{_lambda_.6} parent=0 // pred_fallthru
    _

// kernel: tile.1
$region0: #{tile.1}
  #allocation0 [shape = 's32[1]{0}', space=sflag, size = 0x4, scoped, tag = 'scoped memory for tile.1']
  %s0 = inlined_call_operand.<no memory space> [shape: f32[], index: 0, kind: input, shape index: {}]
  %s1 = inlined_call_operand.vmem [shape: f32[32,1], index: 1, kind: output, shape index: {}]
  %v2 = vstv %s0
  %3 = vst [vmem:[%s1] sm:$0xff] %v2
  %s4 = scalar_lea.vmem %s1, 8
  %5 = vst [vmem:[%s4] sm:$0xff] %v2
  %s6 = scalar_lea.vmem %s1, 16
  %7 = vst [vmem:[%s6] sm:$0xff] %v2
  %s8 = scalar_lea.vmem %s1, 24
  %9 = vst [vmem:[%s8] sm:$0xff] %v2

// kernel: _lambda_.7
$region0: #{_lambda_.7}
  #allocation0 [shape = 'u32[]', space=smem, size = 0x4, offset = 0x4, fixed_abs, tag = 'smem constant byte address 0x4 - core index']
  #allocation1 [shape = 'u32[144,128]{1,0:T(1,128)}', space=vmem, size = 0x12000, scoped, tag = 'internal scratch']
  %s0 = inlined_call_operand.vmem [shape: bf16[32,72], index: 0, kind: input, shape index: {}]
  %s1 = inlined_call_operand.vmem [shape: bf16[72,128], index: 1, kind: input, shape index: {}]
  %s2 = inlined_call_operand.vmem [shape: f32[32,1], index: 2, kind: input, shape index: {}]
  %s3 = inlined_call_operand.vmem [shape: bf16[32,128], index: 3, kind: output, shape index: {}]
  %s4 = sld [smem:[#allocation0]]
  $region22: #{_lambda_.7} parent=0
    _
  %s6 = ssub.s32 1, %s4
  %s7 = scalar_select 0, %s6, %s4
  // Predicated region
  $region2: #{_lambda_.7} parent=0 // pred_check
    _
  $region3: #{_lambda_.7} parent=0 // pred_check_branch
    %9 = sbr.rel (0) target = $region5
  $region4: #{_lambda_.7} parent=0 // pred_region
    _
  $region5: #{_lambda_.7} parent=0 // pred_fallthru
    _
  // Predicated region
  $region6: #{_lambda_.7} parent=0 // pred_check
    _
  $region7: #{_lambda_.7} parent=0 // pred_check_branch
    %11 = sbr.rel (0) target = $region9
  $region8: #{_lambda_.7} parent=0 // pred_region
    _
  $region9: #{_lambda_.7} parent=0 // pred_fallthru
    _
  // Predicated region
  $region10: #{_lambda_.7} parent=0 // pred_check
    _
  $region11: #{_lambda_.7} parent=0 // pred_check_branch
    %13 = sbr.rel (0) target = $region13
  $region12: #{_lambda_.7} parent=0 // pred_region
    _
  $region13: #{_lambda_.7} parent=0 // pred_fallthru
    _
  %v15 = vld [vmem:[%s0] sm:$0xf]
  %v16 = vld [vmem:[%s0 + $0x4] sm:$0xf]
  %v17 = vld [vmem:[%s0 + $0x8] sm:$0xf]
  %v18 = vld [vmem:[%s0 + $0xc] sm:$0xf]
  %v19 = vld [vmem:[%s1] sm:$0xf]
  %v20 = vld [vmem:[%s1 + $0x4] sm:$0xf]
  %v21 = vld [vmem:[%s1 + $0x8] sm:$0xf]
  %v22 = vld [vmem:[%s1 + $0xc] sm:$0xf]
  %v23 = vld [vmem:[%s1 + $0x10] sm:$0xf]
  %v24 = vld [vmem:[%s1 + $0x14] sm:$0xf]
  %v25 = vld [vmem:[%s1 + $0x18] sm:$0xf]
  %v26 = vld [vmem:[%s1 + $0x1c] sm:$0xf]
  %v27 = vld [vmem:[%s1 + $0x20] sm:$0xf]
  %v28 = vld [vmem:[%s2] sm:$0xff]
  %v29 = vld [vmem:[%s2 + $0x8] sm:$0xff]
  %v30 = vld [vmem:[%s2 + $0x10] sm:$0xff]
  %v31 = vld [vmem:[%s2 + $0x18] sm:$0xff]
  %33 = vset.pattern.permute.xlu0 0
  %34 = vperm.xlu0 %33, %v28
  %v35 = vpop.permute.xlu0 %34
  %38 = vset.pattern.permute.xlu0 0
  %39 = vperm.xlu0 %38, %v29
  %v40 = vpop.permute.xlu0 %39
  %43 = vset.pattern.permute.xlu0 0
  %44 = vperm.xlu0 %43, %v30
  %v45 = vpop.permute.xlu0 %44
  %48 = vset.pattern.permute.xlu0 0
  %49 = vperm.xlu0 %48, %v31
  %v50 = vpop.permute.xlu0 %49
  %v56 = vunpack.c.l.b16 %v15
  %v57 = vunpack.c.l.b16 %v16
  %v58 = vunpack.c.l.b16 %v17
  %v59 = vunpack.c.l.b16 %v18
  %v60 = vpack.c.b16 %v57, %v56
  %v61 = vpack.c.b16 %v59, %v58
  %v71 = vunpack.c.l.b16 %v19
  %v72 = vunpack.c.l.b16 %v20
  %v73 = vunpack.c.l.b16 %v21
  %v74 = vunpack.c.l.b16 %v22
  %v75 = vunpack.c.l.b16 %v23
  %v76 = vunpack.c.l.b16 %v24
  %v77 = vunpack.c.l.b16 %v25
  %v78 = vunpack.c.l.b16 %v26
  %v79 = vunpack.c.l.b16 %v27
  %v80 = vpack.c.b16 %v72, %v71
  %v81 = vpack.c.b16 %v74, %v73
  %v82 = vpack.c.b16 %v76, %v75
  %v83 = vpack.c.b16 %v78, %v77
  %v84 = vpack.c.b16 %v79, %v79
  %vm89 = vcmask 588800
  %v91 = vsel %vm89, %v60, 0
  %v94 = vsel %vm89, %v61, 0
  %vm96 = vcmask 1043456
  %v98 = vsel %vm96, %v84, 0
  %100 = vmatprep.subr.bf16.mxu0 0
  %101 = vmatpush1.bf16.msra.mxu0 0
  %102 = vmatprep.subr.bf16.mxu0 0
  %103 = vmatpush1.bf16.msra.mxu0 0
  %104 = vmatprep.subr.bf16.mxu0 0
  %105 = vmatpush1.bf16.msra.mxu0 0
  %106 = vmatprep.subr.bf16.mxu0 0
  %107 = vmatpush1.bf16.msra.mxu0 %v98
  %108 = vmatprep.subr.bf16.mxu0 0
  %109 = vmatpush1.bf16.msra.mxu0 %v83
  %110 = vmatprep.subr.bf16.mxu0 0
  %111 = vmatpush1.bf16.msra.mxu0 %v82
  %112 = vmatprep.subr.bf16.mxu0 0
  %113 = vmatpush1.bf16.msra.mxu0 %v81
  %114 = vmatprep.subr.bf16.mxu0 0
  %115 = vmatpush1.bf16.msra.mxu0 %v80
  %116 = vmatprep.subr.bf16.mxu0 0
  %117 = vmatpush2.bf16.msra.mxu0 0
  %118 = vmatprep.subr.bf16.mxu0 0
  %119 = vmatpush2.bf16.msra.mxu0 0
  %120 = vmatprep.subr.bf16.mxu0 0
  %121 = vmatpush2.bf16.msra.mxu0 0
  %122 = vmatprep.subr.bf16.mxu0 0
  %123 = vmatpush2.bf16.msra.mxu0 0
  %124 = vmatprep.subr.bf16.mxu0 0
  %125 = vmatpush2.bf16.msra.mxu0 0
  %126 = vmatprep.subr.bf16.mxu0 0
  %127 = vmatpush2.bf16.msra.mxu0 0
  %128 = vmatprep.subr.bf16.mxu0 0
  %129 = vmatpush2.bf16.msra.mxu0 0
  %130 = vmatprep.subr.bf16.mxu0 0
  %131 = vmatpush2.bf16.msra.mxu0 0
  %132 = vmatprep.mubr.bf16.mxu0 0
  %133 = vmatmul.mubr.bf16.gmra.mxu0 %v91
  %v134 = vpop.f32.mrf.mxu0
  %v135 = vadd.f32 %v35, %v134
  %v136 = vpop.f32.mrf.mxu0
  %v137 = vpop.f32.mrf.mxu0
  %v138 = vadd.f32 %v40, %v137
  %v139 = vpop.f32.mrf.mxu0
  %140 = vmatprep.mubr.bf16.mxu0 0
  %141 = vmatmul.mubr.bf16.gmra.mxu0 %v94
  %v142 = vpop.f32.mrf.mxu0
  %v143 = vadd.f32 %v45, %v142
  %v144 = vpop.f32.mrf.mxu0
  %v145 = vpop.f32.mrf.mxu0
  %v146 = vadd.f32 %v50, %v145
  %v147 = vpop.f32.mrf.mxu0
  %148 = vdwg.mxu0
  %v149 = vmax.f32 %v135, 0.0
  %v150 = vmax.f32 %v138, 0.0
  %v151 = vmax.f32 %v143, 0.0
  %v152 = vmax.f32 %v146, 0.0
  %v153 = vpack.c.bf16 %v150, %v149
  %v154 = vpack.c.bf16 %v152, %v151
  %v157 = vunpack.c.l.b16 %v153
  %v158 = vunpack.c.h.b16 %v153
  %v159 = vunpack.c.l.b16 %v154
  %v160 = vunpack.c.h.b16 %v154
  %v161 = vpack.c.b16 %v157, %v157
  %v162 = vpack.c.b16 %v158, %v158
  %v163 = vpack.c.b16 %v159, %v159
  %v164 = vpack.c.b16 %v160, %v160
  %169 = vst [vmem:[%s3] sm:$0xf] %v161
  %170 = vst [vmem:[%s3 + $0x4] sm:$0xf] %v162
  %171 = vst [vmem:[%s3 + $0x8] sm:$0xf] %v163
  %172 = vst [vmem:[%s3 + $0xc] sm:$0xf] %v164
  // Predicated region
  $region14: #{_lambda_.7} parent=0 // pred_check
    _
  $region15: #{_lambda_.7} parent=0 // pred_check_branch
    %174 = sbr.rel (0) target = $region17
  $region16: #{_lambda_.7} parent=0 // pred_region
    _
  $region17: #{_lambda_.7} parent=0 // pred_fallthru
    _
  // Predicated region
  $region18: #{_lambda_.7} parent=0 // pred_check
    _
  $region19: #{_lambda_.7} parent=0 // pred_check_branch
    %176 = sbr.rel (0) target = $region21
  $region20: #{_lambda_.7} parent=0 // pred_region
    _
  $region21: #{_lambda_.7} parent=0 // pred_fallthru
    _

// kernel: _lambda_.8
$region0: #{_lambda_.8}
  #allocation0 [shape = 'u32[]', space=smem, size = 0x4, offset = 0x4, fixed_abs, tag = 'smem constant byte address 0x4 - core index']
  #allocation1 [shape = 'u32[144,128]{1,0:T(1,128)}', space=vmem, size = 0x12000, scoped, tag = 'internal scratch']
  %s0 = inlined_call_operand.vmem [shape: bf16[16,72], index: 0, kind: input, shape index: {}]
  %s1 = inlined_call_operand.vmem [shape: bf16[72,128], index: 1, kind: input, shape index: {}]
  %s2 = inlined_call_operand.vmem [shape: f32[16,1], index: 2, kind: input, shape index: {}]
  %s3 = inlined_call_operand.vmem [shape: f32[16,128], index: 3, kind: output, shape index: {}]
  %s4 = sld [smem:[#allocation0]]
  $region22: #{_lambda_.8} parent=0
    _
  %s6 = ssub.s32 1, %s4
  %s7 = scalar_select 0, %s6, %s4
  // Predicated region
  $region2: #{_lambda_.8} parent=0 // pred_check
    _
  $region3: #{_lambda_.8} parent=0 // pred_check_branch
    %9 = sbr.rel (0) target = $region5
  $region4: #{_lambda_.8} parent=0 // pred_region
    _
  $region5: #{_lambda_.8} parent=0 // pred_fallthru
    _
  // Predicated region
  $region6: #{_lambda_.8} parent=0 // pred_check
    _
  $region7: #{_lambda_.8} parent=0 // pred_check_branch
    %11 = sbr.rel (0) target = $region9
  $region8: #{_lambda_.8} parent=0 // pred_region
    _
  $region9: #{_lambda_.8} parent=0 // pred_fallthru
    _
  // Predicated region
  $region10: #{_lambda_.8} parent=0 // pred_check
    _
  $region11: #{_lambda_.8} parent=0 // pred_check_branch
    %13 = sbr.rel (0) target = $region13
  $region12: #{_lambda_.8} parent=0 // pred_region
    _
  $region13: #{_lambda_.8} parent=0 // pred_fallthru
    _
  %v15 = vld [vmem:[%s0] sm:$0xf]
  %v16 = vld [vmem:[%s0 + $0x4] sm:$0xf]
  %v17 = vld [vmem:[%s1] sm:$0xf]
  %v18 = vld [vmem:[%s1 + $0x4] sm:$0xf]
  %v19 = vld [vmem:[%s1 + $0x8] sm:$0xf]
  %v20 = vld [vmem:[%s1 + $0xc] sm:$0xf]
  %v21 = vld [vmem:[%s1 + $0x10] sm:$0xf]
  %v22 = vld [vmem:[%s1 + $0x14] sm:$0xf]
  %v23 = vld [vmem:[%s1 + $0x18] sm:$0xf]
  %v24 = vld [vmem:[%s1 + $0x1c] sm:$0xf]
  %v25 = vld [vmem:[%s1 + $0x20] sm:$0xf]
  %v26 = vld [vmem:[%s2] sm:$0xff]
  %v27 = vld [vmem:[%s2 + $0x8] sm:$0xff]
  %29 = vset.pattern.permute.xlu0 0
  %30 = vperm.xlu0 %29, %v26
  %v31 = vpop.permute.xlu0 %30
  %34 = vset.pattern.permute.xlu0 0
  %35 = vperm.xlu0 %34, %v27
  %v36 = vpop.permute.xlu0 %35
  %v40 = vunpack.c.l.b16 %v15
  %v41 = vunpack.c.l.b16 %v16
  %v42 = vpack.c.b16 %v41, %v40
  %v52 = vunpack.c.l.b16 %v17
  %v53 = vunpack.c.l.b16 %v18
  %v54 = vunpack.c.l.b16 %v19
  %v55 = vunpack.c.l.b16 %v20
  %v56 = vunpack.c.l.b16 %v21
  %v57 = vunpack.c.l.b16 %v22
  %v58 = vunpack.c.l.b16 %v23
  %v59 = vunpack.c.l.b16 %v24
  %v60 = vunpack.c.l.b16 %v25
  %v61 = vpack.c.b16 %v53, %v52
  %v62 = vpack.c.b16 %v55, %v54
  %v63 = vpack.c.b16 %v57, %v56
  %v64 = vpack.c.b16 %v59, %v58
  %v65 = vpack.c.b16 %v60, %v60
  %vm70 = vcmask 588800
  %v72 = vsel %vm70, %v42, 0
  %vm74 = vcmask 1043456
  %v76 = vsel %vm74, %v65, 0
  %78 = vmatprep.subr.bf16.mxu0 0
  %79 = vmatpush1.bf16.msra.mxu0 0
  %80 = vmatprep.subr.bf16.mxu0 0
  %81 = vmatpush1.bf16.msra.mxu0 0
  %82 = vmatprep.subr.bf16.mxu0 0
  %83 = vmatpush1.bf16.msra.mxu0 0
  %84 = vmatprep.subr.bf16.mxu0 0
  %85 = vmatpush1.bf16.msra.mxu0 %v76
  %86 = vmatprep.subr.bf16.mxu0 0
  %87 = vmatpush1.bf16.msra.mxu0 %v64
  %88 = vmatprep.subr.bf16.mxu0 0
  %89 = vmatpush1.bf16.msra.mxu0 %v63
  %90 = vmatprep.subr.bf16.mxu0 0
  %91 = vmatpush1.bf16.msra.mxu0 %v62
  %92 = vmatprep.subr.bf16.mxu0 0
  %93 = vmatpush1.bf16.msra.mxu0 %v61
  %94 = vmatprep.subr.bf16.mxu0 0
  %95 = vmatpush2.bf16.msra.mxu0 0
  %96 = vmatprep.subr.bf16.mxu0 0
  %97 = vmatpush2.bf16.msra.mxu0 0
  %98 = vmatprep.subr.bf16.mxu0 0
  %99 = vmatpush2.bf16.msra.mxu0 0
  %100 = vmatprep.subr.bf16.mxu0 0
  %101 = vmatpush2.bf16.msra.mxu0 0
  %102 = vmatprep.subr.bf16.mxu0 0
  %103 = vmatpush2.bf16.msra.mxu0 0
  %104 = vmatprep.subr.bf16.mxu0 0
  %105 = vmatpush2.bf16.msra.mxu0 0
  %106 = vmatprep.subr.bf16.mxu0 0
  %107 = vmatpush2.bf16.msra.mxu0 0
  %108 = vmatprep.subr.bf16.mxu0 0
  %109 = vmatpush2.bf16.msra.mxu0 0
  %110 = vmatprep.mubr.bf16.mxu0 0
  %111 = vmatmul.mubr.bf16.gmra.mxu0 %v72
  %v112 = vpop.f32.mrf.mxu0
  %v113 = vadd.f32 %v31, %v112
  %v114 = vpop.f32.mrf.mxu0
  %v115 = vpop.f32.mrf.mxu0
  %v116 = vadd.f32 %v36, %v115
  %v117 = vpop.f32.mrf.mxu0
  %118 = vdwg.mxu0
  %119 = vst [vmem:[%s3] sm:$0xff] %v113
  %120 = vst [vmem:[%s3 + $0x8] sm:$0xff] %v116
  // Predicated region
  $region14: #{_lambda_.8} parent=0 // pred_check
    _
  $region15: #{_lambda_.8} parent=0 // pred_check_branch
    %122 = sbr.rel (0) target = $region17
  $region16: #{_lambda_.8} parent=0 // pred_region
    _
  $region17: #{_lambda_.8} parent=0 // pred_fallthru
    _
  // Predicated region
  $region18: #{_lambda_.8} parent=0 // pred_check
    _
  $region19: #{_lambda_.8} parent=0 // pred_check_branch
    %124 = sbr.rel (0) target = $region21
  $region20: #{_lambda_.8} parent=0 // pred_region
    _
  $region21: #{_lambda_.8} parent=0 // pred_fallthru
    _

// kernel: _lambda_.9
$region0: #{_lambda_.9}
  #allocation0 [shape = 'u32[]', space=smem, size = 0x4, offset = 0x4, fixed_abs, tag = 'smem constant byte address 0x4 - core index']
  #allocation1 [shape = 'u32[144,128]{1,0:T(1,128)}', space=vmem, size = 0x12000, scoped, tag = 'internal scratch']
  #allocation2 [shape = 'f32[8,128]{1,0:T(8,128)}', space=vmem, size = 0x1000, scoped, tag = 'scratch operand']
  %s0 = inlined_call_operand.vmem [shape: f32[8,128], index: 0, kind: input, shape index: {}]
  %s1 = inlined_call_operand.vmem [shape: f32[8,1], index: 1, kind: input, shape index: {}]
  %s2 = inlined_call_operand.vmem [shape: f32[8,1], index: 2, kind: input, shape index: {}]
  %s3 = inlined_call_operand.hbm [shape: f32[1,1], index: 3, kind: output, shape index: {}]
  %s4 = sld [smem:[#allocation0]]
  $region30: #{_lambda_.9} parent=0
    _
  %s6 = ssub.s32 1, %s4
  %s7 = scalar_select 0, %s6, %s4
  $region1: #{_lambda_.9} parent=0
    #allocation3 [shape = 'u8[512]{0}', space=vmem, size = 0x400, scoped, tag = 'output window, operand 0, single buffered']
    #allocation4 [shape = 's32[1]{0}', space=sflag, size = 0x4, scoped, tag = 'scoped memory for _lambda_.9']
    %8 = vsyncpa [#allocation4], 0
    // Predicated region
    $region2: #{_lambda_.9} parent=1 // pred_check
      _
    $region3: #{_lambda_.9} parent=1 // pred_check_branch
      %10 = sbr.rel (0) target = $region5
    $region4: #{_lambda_.9} parent=1 // pred_region
      _
    $region5: #{_lambda_.9} parent=1 // pred_fallthru
      _
    // Predicated region
    $region6: #{_lambda_.9} parent=1 // pred_check
      _
    $region7: #{_lambda_.9} parent=1 // pred_check_branch
      %12 = sbr.rel (0) target = $region9
    $region8: #{_lambda_.9} parent=1 // pred_region
      _
    $region9: #{_lambda_.9} parent=1 // pred_fallthru
      _
    // Predicated region
    $region10: #{_lambda_.9} parent=1 // pred_check
      _
    $region11: #{_lambda_.9} parent=1 // pred_check_branch
      %14 = sbr.rel (0) target = $region13
    $region12: #{_lambda_.9} parent=1 // pred_region
      _
    $region13: #{_lambda_.9} parent=1 // pred_fallthru
      _
    %p15 = scmp.eq.s32.totalorder 0, 0
    // Predicated region
    $region14: #{_lambda_.9} parent=1 // pred_check
      %p16 = pneg %p15
    $region15: #{_lambda_.9} parent=1 // pred_check_branch
      %18 = sbr.rel (%p16) target = $region17
    $region16: #{_lambda_.9} parent=1 // pred_region
      %19 = vst [vmem:[#allocation2] sm:$0xff] 0.0
    $region17: #{_lambda_.9} parent=1 // pred_fallthru
      _
    %v20 = vld [vmem:[%s0] sm:$0xff]
    %v21 = vld [vmem:[%s1] sm:$0xff]
    %v22 = vld [vmem:[%s2] sm:$0xff]
    %v23 = vadd.f32 %v20, 0.5
    %25 = vset.pattern.permute.xlu0 0
    %26 = vperm.xlu0 %25, %v21
    %v27 = vpop.permute.xlu0 %26
    %v29 = vmul.f32 %v27, %v23
    %31 = vset.pattern.permute.xlu0 0
    %32 = vperm.xlu0 %31, %v22
    %v33 = vpop.permute.xlu0 %32
    %v35 = vadd.f32 %v29, %v33
    %v36 = vxor.u32 %v35, 2147483648
    %v37 = vmul.f32 %v36, 1.442695
    %v38 = vpow.pop %v37
    %v39 = vadd.f32 %v38, 1.0
    %v40 = vrcp.pop %v39
    %v41 = vmul.f32 1.0, %v40
    %v42 = vsub.f32 %v20, 0.5
    %v43 = vmul.f32 %v27, %v42
    %v44 = vadd.f32 %v43, %v33
    %v45 = vxor.u32 %v44, 2147483648
    %v46 = vmul.f32 %v45, 1.442695
    %v47 = vpow.pop %v46
    %v48 = vadd.f32 %v47, 1.0
    %v49 = vrcp.pop %v48
    %v50 = vmul.f32 1.0, %v49
    %v51 = vsub.f32 %v41, %v50
    %v52 = vmax.f32 %v51, 1e-09
    %v53 = vld [vmem:[#allocation2] sm:$0xff]
    %v54 = vlog2.pop %v52
    %v55 = vmul.f32 %v54, 0.6931472
    %v56 = vmul.f32 %v55, -1.442695
    %v57 = vadd.f32 %v53, %v56
    %58 = vst [vmem:[#allocation2] sm:$0xff] %v57
    // Predicated region
    $region18: #{_lambda_.9} parent=1 // pred_check
      %p59 = pneg %p15
    $region19: #{_lambda_.9} parent=1 // pred_check_branch
      %61 = sbr.rel (%p59) target = $region21
    $region20: #{_lambda_.9} parent=1 // pred_region
      %v62 = vld [vmem:[#allocation2] sm:$0xff]
      %63 = vadd.xlane.f32.xlu0 %v62
      %v64 = vpop.xlane.xlu0 %63
      %v65 = vrot.slane %v64, 4
      %v66 = vadd.f32 %v64, %v65
      %v67 = vrot.slane %v66, 2
      %v68 = vadd.f32 %v66, %v67
      %v69 = vrot.slane %v68, 1
      %v70 = vadd.f32 %v68, %v69
      %s71 = vtos %v70
      %v72 = vstv %s71
      %vm73 = vcmask 0
      %74 = vst.msk [vmem:[#allocation3] sm:$0x1] %vm73, %v72
    $region21: #{_lambda_.9} parent=1 // pred_fallthru
      _
    // Predicated region
    $region22: #{_lambda_.9} parent=1 // pred_check
      _
    $region23: #{_lambda_.9} parent=1 // pred_check_branch
      %76 = sbr.rel (0) target = $region25
    $region24: #{_lambda_.9} parent=1 // pred_region
      %s78 = ssub.s32 16, 16
      %79 = vsyncadd [#allocation4], %s78
      %s81 = sshll.u32 [#allocation3], 4
      %s82 = int_to_ptr.vmem [resolvable:$true] %s81
      %84 = dma.vmem_to_hbm [thread:$0]  %s82, 16, %s3, [#allocation4]
    $region25: #{_lambda_.9} parent=1 // pred_fallthru
      _
    // Predicated region
    $region26: #{_lambda_.9} parent=1 // pred_check
      _
    $region27: #{_lambda_.9} parent=1 // pred_check_branch
      %86 = sbr.rel (0) target = $region29
    $region28: #{_lambda_.9} parent=1 // pred_region
      %87 = dma.done [#allocation4], 16
    $region29: #{_lambda_.9} parent=1 // pred_fallthru
      _
    %88 = vsyncpa [#allocation4], 1

</llo_original>
